<compile_context>
chip_gen: v7x
topology: tpu7x:2x2x1
jax: 0.10.0
libtpu: 0.0.40
codegen_flags: <defaults>
</compile_context>

<pallas_src>
import math

import jax
import jax.numpy as jnp
from jax.experimental import pallas as pl
from jax.experimental.pallas import tpu as pltpu


def _tgt_select_matmul_kernel(meta_ref, d_ref, out_ref):
    """Whole-batch kernel (single grid step).

    meta_ref : VMEM int32[B, 4]  columns = [t_row, i_row, coef_t, coef_i]
    d_ref    : VMEM f32[K, N]    stacked deltas
    out_ref  : VMEM f32[B, N]
    """
    B = out_ref.shape[0]
    K = d_ref.shape[0]

    t_row = meta_ref[:, 0:1]                               # (B, 1) int32
    i_row = meta_ref[:, 1:2]                               # (B, 1) int32
    coef_t = meta_ref[:, 2:3].astype(jnp.float32)          # (B, 1) f32
    coef_i = meta_ref[:, 3:4].astype(jnp.float32)          # (B, 1) f32

    # Signed one-hot selection matrix S (B, K) built on the VPU (f32 — MXU on v7x
    # has no integer path).  Additive so t_row == i_row sums the coefficients.
    k_iota = jax.lax.broadcasted_iota(jnp.int32, (B, K), 1)
    s = (jnp.where(k_iota == t_row, coef_t, 0.0)
         + jnp.where(k_iota == i_row, coef_i, 0.0))        # (B, K) f32

    # One MXU push for the whole batch; one lane-dense store of the (B, N) block.
    out_ref[...] = jnp.dot(
        s, d_ref[...], preferred_element_type=jnp.float32
    ).astype(out_ref.dtype)


def _query_meta(K, initial_ci, target_ci):
    """Row indices + signed coefficients reproducing the PyTorch branches exactly."""
    initial_ci = jnp.asarray(initial_ci, jnp.int32)
    target_ci = jnp.asarray(target_ci, jnp.int32)
    # target_ci == 0 maps to the last row (Python negative indexing in tgt.py).
    t_row = jnp.where(target_ci == 0, K - 1, target_ci - 1).astype(jnp.int32)
    i_row = jnp.where(initial_ci == 0, K - 1, initial_ci - 1).astype(jnp.int32)
    # target contributes +1 except in the (target==0, initial!=0) branch;
    # initial contributes -1 except when initial==0.
    coef_t = jnp.where((target_ci == 0) & (initial_ci != 0), 0, 1).astype(jnp.int32)
    coef_i = jnp.where(initial_ci == 0, 0, -1).astype(jnp.int32)
    return jnp.stack([t_row, i_row, coef_t, coef_i], axis=-1)  # (..., 4)


@jax.jit
def tgt_forward_batched(deltas, initial_cis, target_cis):
    """Batched TGT forward: B queries, one pallas_call, one grid step.

    deltas: (K, N) float32 stacked delta parameters (K = num_clusters - 1).
    initial_cis / target_cis: int32[B].  Returns (B, N): row b is the delta for
    (initial_cis[b], target_cis[b]).
    """
    K, N = deltas.shape
    B = initial_cis.shape[0]
    meta = _query_meta(K, initial_cis, target_cis)  # (B, 4) int32

    return pl.pallas_call(
        _tgt_select_matmul_kernel,
        out_shape=jax.ShapeDtypeStruct((B, N), deltas.dtype),
        grid=(1,),
        in_specs=[
            # Full-array blocks: everything VMEM-resident, one inbound DMA each.
            pl.BlockSpec((B, 4), lambda i: (0, 0)),
            pl.BlockSpec((K, N), lambda i: (0, 0)),
        ],
        out_specs=pl.BlockSpec((B, N), lambda i: (0, 0)),
        compiler_params=pltpu.CompilerParams(
            dimension_semantics=("arbitrary",),
        ),
    )(meta, deltas)


@jax.jit
def tgt_forward(deltas, initial_ci, target_ci):
    """Single-query TGT forward (PyTorch module API): returns (1, N).

    Routed through the batched path with B=1 so there is no dedicated per-query
    launch machinery; indices are traced int32 scalars -> one compile for all pairs.
    """
    initial_ci = jnp.reshape(jnp.asarray(initial_ci, jnp.int32), (1,))
    target_ci = jnp.reshape(jnp.asarray(target_ci, jnp.int32), (1,))
    return tgt_forward_batched(deltas, initial_ci, target_ci)


def init_tgt_deltas(key, input_ndim: int, num_clusters: int,
                    init_mode: str = "xavier_uniform") -> jax.Array:
    """Deterministic init matching torch.nn.init.xavier_uniform_ on (1, input_ndim)."""
    K = num_clusters - 1
    if init_mode == "zero":
        return jnp.zeros((K, input_ndim), dtype=jnp.float32)
    if init_mode != "xavier_uniform":
        raise ValueError(f"Unknown init_mode {init_mode}")
    # For a (1, input_ndim) parameter: fan_in = input_ndim, fan_out = 1.
    bound = math.sqrt(6.0 / (input_ndim + 1))
    keys = jax.random.split(key, K)
    rows = [
        jax.random.uniform(k, (1, input_ndim), minval=-bound, maxval=bound,
                           dtype=jnp.float32)
        for k in keys
    ]
    return jnp.concatenate(rows, axis=0)  # (K, N)


def _tgt_reference(deltas, initial_ci, target_ci):
    """Pure-JAX reference mirroring the PyTorch forward branches (Python ints)."""
    if initial_ci == 0:
        return deltas[target_ci - 1][None, :]
    elif target_ci == 0:
        return -1.0 * deltas[initial_ci - 1][None, :]
    else:
        return (deltas[target_ci - 1] + deltas[initial_ci - 1] * -1.0)[None, :]


if __name__ == "__main__":
    input_ndim = 32
    num_clusters = 4  # -> K = 3 stacked deltas

    key = jax.random.PRNGKey(0)
    deltas = init_tgt_deltas(key, input_ndim, num_clusters, "xavier_uniform")

    # Covers all branches, the (0,0) negative-index corner, and t_row==i_row.
    cases = [(0, 2), (2, 0), (1, 3), (3, 1), (0, 0), (2, 2)]
    ok = True

    # Batched path: all queries in one launch, one grid step.
    pairs = jnp.array(cases, dtype=jnp.int32)
    out_b = jax.block_until_ready(
        tgt_forward_batched(deltas, pairs[:, 0], pairs[:, 1]))
    ref_b = jnp.concatenate([_tgt_reference(deltas, i, t) for i, t in cases],
                            axis=0)
    ok &= out_b.shape == (len(cases), input_ndim)
    ok &= bool(jnp.allclose(out_b, ref_b, atol=1e-5))

    # Single-query path (matches the PyTorch module API).
    for initial_ci, target_ci in cases:
        out = jax.block_until_ready(
            tgt_forward(deltas, jnp.int32(initial_ci), jnp.int32(target_ci)))
        ref = _tgt_reference(deltas, initial_ci, target_ci)
        ok &= out.shape == (1, input_ndim)
        ok &= bool(jnp.allclose(out, ref, atol=1e-5))

    # TODO(synk): if N < 128 and the consumer allows it, pack ceil(128/N) queries
    # per 128-lane output row in the wrapper for fully unmasked vst stores.
    print("KERNEL_OK" if ok else "KERNEL_MISMATCH")
</pallas_src>

<mosaic_0001>
module attributes {stable_mosaic.version = 11 : i64} {
  func.func @_tgt_select_matmul_kernel(%arg0: i32, %arg1: memref<6x4xi32, #tpu.memory_space<vmem>>, %arg2: memref<3x32xf32, #tpu.memory_space<vmem>>, %arg3: memref<6x32xf32, #tpu.memory_space<vmem>>) attributes {dimension_semantics = [#tpu.dimension_semantics<arbitrary>], iteration_bounds = array<i64: 1>, scalar_prefetch = 0 : i64, scratch_operands = 0 : i64, tpu.core_type = #tpu.core_type<tc>, window_params = [{pipeline_mode = #tpu.pipeline_mode<synchronous>, transform_indices = @transform_0, window_bounds = array<i64: 6, 4>}, {pipeline_mode = #tpu.pipeline_mode<synchronous>, transform_indices = @transform_1, window_bounds = array<i64: 3, 32>}, {pipeline_mode = #tpu.pipeline_mode<synchronous>, transform_indices = @transform_2, window_bounds = array<i64: 6, 32>}]} {
    %c0 = arith.constant 0 : index
    %c0_0 = arith.constant 0 : index
    %0 = vector.load %arg1[%c0, %c0_0] : memref<6x4xi32, #tpu.memory_space<vmem>>, vector<6x1xi32>
    %c0_1 = arith.constant 0 : index
    %c1 = arith.constant 1 : index
    %1 = vector.load %arg1[%c0_1, %c1] : memref<6x4xi32, #tpu.memory_space<vmem>>, vector<6x1xi32>
    %c0_2 = arith.constant 0 : index
    %c2 = arith.constant 2 : index
    %2 = vector.load %arg1[%c0_2, %c2] : memref<6x4xi32, #tpu.memory_space<vmem>>, vector<6x1xi32>
    %3 = arith.sitofp %2 : vector<6x1xi32> to vector<6x1xf32>
    %c0_3 = arith.constant 0 : index
    %c3 = arith.constant 3 : index
    %4 = vector.load %arg1[%c0_3, %c3] : memref<6x4xi32, #tpu.memory_space<vmem>>, vector<6x1xi32>
    %5 = arith.sitofp %4 : vector<6x1xi32> to vector<6x1xf32>
    %6 = tpu.iota {dimensions = array<i32: 1>} : vector<6x3xi32>
    %7 = vector.broadcast %0 : vector<6x1xi32> to vector<6x3xi32>
    %8 = arith.cmpi eq, %6, %7 : vector<6x3xi32>
    %cst = arith.constant 0.000000e+00 : f32
    %9 = vector.shape_cast %3 : vector<6x1xf32> to vector<6x1xf32>
    %10 = vector.broadcast %9 : vector<6x1xf32> to vector<6x3xf32>
    %11 = vector.broadcast %cst : f32 to vector<6x3xf32>
    %12 = arith.select %8, %10, %11 : vector<6x3xi1>, vector<6x3xf32>
    %13 = vector.broadcast %1 : vector<6x1xi32> to vector<6x3xi32>
    %14 = arith.cmpi eq, %6, %13 : vector<6x3xi32>
    %cst_4 = arith.constant 0.000000e+00 : f32
    %15 = vector.shape_cast %5 : vector<6x1xf32> to vector<6x1xf32>
    %16 = vector.broadcast %15 : vector<6x1xf32> to vector<6x3xf32>
    %17 = vector.broadcast %cst_4 : f32 to vector<6x3xf32>
    %18 = arith.select %14, %16, %17 : vector<6x3xi1>, vector<6x3xf32>
    %19 = arith.addf %12, %18 : vector<6x3xf32>
    %c0_5 = arith.constant 0 : index
    %c0_6 = arith.constant 0 : index
    %20 = vector.load %arg2[%c0_5, %c0_6] : memref<3x32xf32, #tpu.memory_space<vmem>>, vector<3x32xf32>
    %cst_7 = arith.constant dense<0.000000e+00> : vector<6x32xf32>
    %21 = tpu.matmul %19, %20, %cst_7 {dimension_numbers = #tpu.dot_dimension_numbers<[1], [0], [0], [1], [0, 0, 1, 1], [], []>} : vector<6x3xf32>, vector<3x32xf32>, vector<6x32xf32> -> vector<6x32xf32>
    %c0_8 = arith.constant 0 : index
    %c0_9 = arith.constant 0 : index
    %22 = vector.load %arg3[%c0_8, %c0_9] : memref<6x32xf32, #tpu.memory_space<vmem>>, vector<6x32xf32>
    tpu.vector_store %arg3[%c0_8, %c0_9], %21 {strides = array<i32>} : memref<6x32xf32, #tpu.memory_space<vmem>>, vector<6x32xf32>,
    return
  }
  func.func @transform_0(%arg0: i32) -> (i32, i32) {
    %c0_i32 = arith.constant 0 : i32
    %c0_i32_0 = arith.constant 0 : i32
    %c0_i32_1 = arith.constant 0 : i32
    return %c0_i32, %c0_i32_0 : i32, i32
  }
  func.func @transform_1(%arg0: i32) -> (i32, i32) {
    %c0_i32 = arith.constant 0 : i32
    %c0_i32_0 = arith.constant 0 : i32
    %c0_i32_1 = arith.constant 0 : i32
    return %c0_i32, %c0_i32_0 : i32, i32
  }
  func.func @transform_2(%arg0: i32) -> (i32, i32) {
    %c0_i32 = arith.constant 0 : i32
    %c0_i32_0 = arith.constant 0 : i32
    %c0_i32_1 = arith.constant 0 : i32
    return %c0_i32, %c0_i32_0 : i32, i32
  }
}

</mosaic_0001>

<llo_original>
// kernel: tgt_forward_batched.1
$region0: #{tgt_forward_batched.1}
  #allocation0 [shape = 'u32[]', space=smem, size = 0x4, offset = 0x4, fixed_abs, tag = 'smem constant byte address 0x4 - core index']
  #allocation1 [shape = 'u32[144,128]{1,0:T(1,128)}', space=vmem, size = 0x12000, scoped, tag = 'internal scratch']
  %s0 = inlined_call_operand.vmem [shape: s32[6,4], index: 0, kind: input, shape index: {}]
  %s1 = inlined_call_operand.vmem [shape: f32[3,32], index: 1, kind: input, shape index: {}]
  %s2 = inlined_call_operand.hbm [shape: f32[6,32], index: 2, kind: output, shape index: {}]
  %s3 = sld [smem:[#allocation0]]
  $region18: #{tgt_forward_batched.1} parent=0
    _
  %s5 = ssub.s32 1, %s3
  %s6 = scalar_select 0, %s5, %s3
  $region1: #{tgt_forward_batched.1} parent=0
    #allocation2 [shape = 'u8[4096]{0}', space=vmem, size = 0x1000, scoped, tag = 'output window, operand 0, single buffered']
    #allocation3 [shape = 's32[1]{0}', space=sflag, size = 0x4, scoped, tag = 'scoped memory for tgt_forward_batched.1']
    %7 = vsyncpa [#allocation3], 0
    // Predicated region
    $region2: #{tgt_forward_batched.1} parent=1 // pred_check
      _
    $region3: #{tgt_forward_batched.1} parent=1 // pred_check_branch
      %9 = sbr.rel (0) target = $region5
    $region4: #{tgt_forward_batched.1} parent=1 // pred_region
      _
    $region5: #{tgt_forward_batched.1} parent=1 // pred_fallthru
      _
    // Predicated region
    $region6: #{tgt_forward_batched.1} parent=1 // pred_check
      _
    $region7: #{tgt_forward_batched.1} parent=1 // pred_check_branch
      %11 = sbr.rel (0) target = $region9
    $region8: #{tgt_forward_batched.1} parent=1 // pred_region
      _
    $region9: #{tgt_forward_batched.1} parent=1 // pred_fallthru
      _
    %v12 = vld [vmem:[%s0] sm:$0x3f]
    %v13 = vcvt.s32.f32 %v12
    %v14 = vlaneseq
    %v15 = vand.u32 %v14, 127
    %16 = vset.pattern.permute.xlu0 0
    %17 = vperm.xlu0 %16, %v12
    %v18 = vpop.permute.xlu0 %17
    %vm19 = vcmp.eq.s32.totalorder %v15, %v18
    %21 = vset.pattern.permute.xlu0 2
    %22 = vperm.xlu0 %21, %v13
    %v23 = vpop.permute.xlu0 %22
    %v25 = vsel %vm19, %v23, 0.0
    %26 = vset.pattern.permute.xlu0 1
    %27 = vperm.xlu0 %26, %v12
    %v28 = vpop.permute.xlu0 %27
    %vm29 = vcmp.eq.s32.totalorder %v15, %v28
    %30 = vset.pattern.permute.xlu0 3
    %31 = vperm.xlu0 %30, %v13
    %v32 = vpop.permute.xlu0 %31
    %v34 = vsel %vm29, %v32, 0.0
    %v35 = vadd.f32 %v25, %v34
    %v36 = vld [vmem:[%s1] sm:$0x7]
    %vm37 = vcmask 23552
    %v39 = vsel %vm37, %v35, 0
    %vm41 = vcmask 1042432
    %v43 = vsel %vm41, %v36, 0
    %45 = vmatprep.subr.mxu0 0.0
    %46 = vmatpush1.msra.mxu0 %v43
    %47 = vmatprep.subr.mxu0 0.0
    %48 = vmatpush1.msra.mxu0 0.0
    %49 = vmatprep.subr.mxu0 0.0
    %50 = vmatpush1.msra.mxu0 0.0
    %51 = vmatprep.subr.mxu0 0.0
    %52 = vmatpush1.msra.mxu0 0.0
    %53 = vmatprep.subr.mxu0 0.0
    %54 = vmatpush1.msra.mxu0 0.0
    %55 = vmatprep.subr.mxu0 0.0
    %56 = vmatpush1.msra.mxu0 0.0
    %57 = vmatprep.subr.mxu0 0.0
    %58 = vmatpush1.msra.mxu0 0.0
    %59 = vmatprep.subr.mxu0 0.0
    %60 = vmatpush1.msra.mxu0 0.0
    %61 = vmatprep.subr.mxu0 0.0
    %62 = vmatpush1.msra.mxu0 0.0
    %63 = vmatprep.subr.mxu0 0.0
    %64 = vmatpush1.msra.mxu0 0.0
    %65 = vmatprep.subr.mxu0 0.0
    %66 = vmatpush1.msra.mxu0 0.0
    %67 = vmatprep.subr.mxu0 0.0
    %68 = vmatpush1.msra.mxu0 0.0
    %69 = vmatprep.subr.mxu0 0.0
    %70 = vmatpush1.msra.mxu0 0.0
    %71 = vmatprep.subr.mxu0 0.0
    %72 = vmatpush1.msra.mxu0 0.0
    %73 = vmatprep.subr.mxu0 0.0
    %74 = vmatpush1.msra.mxu0 0.0
    %75 = vmatprep.subr.mxu0 0.0
    %76 = vmatpush1.msra.mxu0 0.0
    %77 = vmatprep.subr.mxu0 0.0
    %78 = vmatpush1.msra.mxu0 0.0
    %79 = vmatprep.subr.mxu0 0.0
    %80 = vmatpush1.msra.mxu0 0.0
    %81 = vmatprep.subr.mxu0 0.0
    %82 = vmatpush1.msra.mxu0 0.0
    %83 = vmatprep.subr.mxu0 0.0
    %84 = vmatpush1.msra.mxu0 0.0
    %85 = vmatprep.subr.mxu0 0.0
    %86 = vmatpush1.msra.mxu0 0.0
    %87 = vmatprep.subr.mxu0 0.0
    %88 = vmatpush1.msra.mxu0 0.0
    %89 = vmatprep.subr.mxu0 0.0
    %90 = vmatpush1.msra.mxu0 0.0
    %91 = vmatprep.subr.mxu0 0.0
    %92 = vmatpush1.msra.mxu0 0.0
    %93 = vmatprep.subr.mxu0 0.0
    %94 = vmatpush1.msra.mxu0 0.0
    %95 = vmatprep.subr.mxu0 0.0
    %96 = vmatpush1.msra.mxu0 0.0
    %97 = vmatprep.subr.mxu0 0.0
    %98 = vmatpush1.msra.mxu0 0.0
    %99 = vmatprep.subr.mxu0 0.0
    %100 = vmatpush1.msra.mxu0 0.0
    %101 = vmatprep.subr.mxu0 0.0
    %102 = vmatpush1.msra.mxu0 0.0
    %103 = vmatprep.subr.mxu0 0.0
    %104 = vmatpush1.msra.mxu0 0.0
    %105 = vmatprep.subr.mxu0 0.0
    %106 = vmatpush1.msra.mxu0 0.0
    %107 = vmatprep.subr.mxu0 0.0
    %108 = vmatpush1.msra.mxu0 0.0
    %109 = vmatprep.mubr.f32.mxu0 0.0
    %110 = vmatmul.mubr.f32.gmra.mrb[0].mxu0 %v39
    %v111 = vpop.f32.mrb[0].mxu0
    %v112 = vadd.f32 0.0, %v111
    %v113 = vpop.f32.mrb[0].mxu0
    %114 = vdwg.mxu0
    %vm115 = vcmask 259072
    %116 = vst.msk [vmem:[#allocation2] sm:$0x3f] %vm115, %v112
    // Predicated region
    $region10: #{tgt_forward_batched.1} parent=1 // pred_check
      _
    $region11: #{tgt_forward_batched.1} parent=1 // pred_check_branch
      %118 = sbr.rel (0) target = $region13
    $region12: #{tgt_forward_batched.1} parent=1 // pred_region
      %s120 = ssub.s32 128, 128
      %121 = vsyncadd [#allocation3], %s120
      %s123 = sshll.u32 [#allocation2], 4
      %s124 = int_to_ptr.vmem [resolvable:$true] %s123
      %126 = dma.vmem_to_hbm [thread:$0]  %s124, 128, %s2, [#allocation3]
    $region13: #{tgt_forward_batched.1} parent=1 // pred_fallthru
      _
    // Predicated region
    $region14: #{tgt_forward_batched.1} parent=1 // pred_check
      _
    $region15: #{tgt_forward_batched.1} parent=1 // pred_check_branch
      %128 = sbr.rel (0) target = $region17
    $region16: #{tgt_forward_batched.1} parent=1 // pred_region
      %129 = dma.done [#allocation3], 128
    $region17: #{tgt_forward_batched.1} parent=1 // pred_fallthru
      _
    %130 = vsyncpa [#allocation3], 1

</llo_original>
